<compile_context>
chip_gen: v7x
topology: tpu7x:2x2x1
jax: 0.10.0
libtpu: 0.0.40
codegen_flags: <defaults>
</compile_context>

<pallas_src>
import functools

import jax
import jax.numpy as jnp
from jax.experimental import pallas as pl
from jax.experimental.pallas import tpu as pltpu


# --------------------------------------------------------------------------- #
# Kernel 0: fused node projection, hoisted out of the edge loop.
# Columns of the fused weight are ordered [src_gate | dst_update | dst_gate |
# src_update]; the result is split once here into four lane-dense arrays.
# --------------------------------------------------------------------------- #
def _node_proj_kernel(node_ref, w_ref, b_ref,
                      esrc_ref, bh_ref, edst_ref, ah_ref):
    f = esrc_ref.shape[1]
    proj = (jnp.dot(node_ref[...], w_ref[...],
                    preferred_element_type=jnp.float32) + b_ref[...])  # [N,4F]
    esrc_ref[...] = proj[:, 0:f]            # src_gate(h)
    bh_ref[...] = proj[:, f:2 * f]          # dst_update(h)  (Bh)
    edst_ref[...] = proj[:, 2 * f:3 * f]    # dst_gate(h)
    ah_ref[...] = proj[:, 3 * f:4 * f]      # src_update(h)  (Ah)


# --------------------------------------------------------------------------- #
# Kernel A: streamed edge tiles; gathers/scatter via in-kernel one-hot matmuls
# generated from O(E) int32 index columns; node branch finalized on last step.
# --------------------------------------------------------------------------- #
def _egc_accumulate_kernel(edge_ref, src_ref, dst_ref,
                           esrc_ref, bh_ref, edst_ref, ah_ref, node_ref,
                           w_edge_ref, b_edge_ref, gamma_n_ref, beta_n_ref,
                           x_out_ref, m_out_ref, stats_ref,
                           agg_h_ref, agg_s_ref, sum_m_ref, sum_m2_ref,
                           *, num_edges):
    i = pl.program_id(0)
    n_nodes = esrc_ref.shape[0]

    @pl.when(i == 0)
    def _init():
        agg_h_ref[...] = jnp.zeros_like(agg_h_ref)
        agg_s_ref[...] = jnp.zeros_like(agg_s_ref)
        sum_m_ref[...] = jnp.zeros_like(sum_m_ref)
        sum_m2_ref[...] = jnp.zeros_like(sum_m2_ref)

    # ---- per edge tile -----------------------------------------------------
    e_tile = edge_ref[...]                                   # [tE, F]
    te = e_tile.shape[0]
    edge_proj = (jnp.dot(e_tile, w_edge_ref[...],
                         preferred_element_type=jnp.float32) + b_edge_ref[...])

    src = src_ref[...]                                       # [tE, 1] (-1 = pad)
    dst = dst_ref[...]                                       # [tE, 1] (-1 = pad)
    lane_n = jax.lax.broadcasted_iota(jnp.int32, (te, n_nodes), 1)
    src_oh = (lane_n == src).astype(jnp.float32)             # [tE, N], 0-rows for pad
    dst_oh = (lane_n == dst).astype(jnp.float32)             # [tE, N]

    # Gathers (row selection via exact one-hot matmuls; no column slicing).
    g_esrc = jnp.dot(src_oh, esrc_ref[...], preferred_element_type=jnp.float32)
    g_bh = jnp.dot(src_oh, bh_ref[...], preferred_element_type=jnp.float32)
    g_edst = jnp.dot(dst_oh, edst_ref[...], preferred_element_type=jnp.float32)

    m = g_esrc + g_edst + edge_proj                          # u_add_v + edge_gate
    sigma = jax.nn.sigmoid(m)
    msg = g_bh * sigma                                       # Bh[src] * sigma
    m_out_ref[...] = m

    # Scatter (segment-sum over destination nodes), two separate accumulators.
    agg_h_ref[...] += jax.lax.dot_general(
        dst_oh, msg, dimension_numbers=(((0,), (0,)), ((), ())),
        preferred_element_type=jnp.float32)                  # [N, F]
    agg_s_ref[...] += jax.lax.dot_general(
        dst_oh, sigma, dimension_numbers=(((0,), (0,)), ((), ())),
        preferred_element_type=jnp.float32)                  # [N, F]

    # Edge BatchNorm running sums (padded rows masked out).
    valid = (dst >= 0).astype(jnp.float32)                   # [tE, 1]
    m_valid = m * valid
    sum_m_ref[...] += jnp.sum(m_valid, axis=0, keepdims=True)
    sum_m2_ref[...] += jnp.sum(m_valid * m, axis=0, keepdims=True)

    # ---- last step: finalize node branch + edge statistics ------------------
    @pl.when(i == pl.num_programs(0) - 1)
    def _finalize():
        denom = agg_s_ref[...] + 1e-6
        r = pl.reciprocal(denom, approx=True)
        r = r * (2.0 - denom * r)                # one Newton step -> ~f32 1/x
        x = ah_ref[...] + agg_h_ref[...] * r     # src_update(h) + aggregate

        # Node BatchNorm (training mode, biased var), two-pass + SiLU + residual.
        mean_x = jnp.mean(x, axis=0, keepdims=True)
        xc = x - mean_x
        var_x = jnp.maximum(jnp.mean(xc * xc, axis=0, keepdims=True), 0.0)
        xh = xc * jax.lax.rsqrt(var_x + 1e-5) * gamma_n_ref[...] + beta_n_ref[...]
        x_out_ref[...] = node_ref[...] + xh * jax.nn.sigmoid(xh)

        # Edge BN statistics (over REAL edges only) for kernel B.
        inv_e = 1.0 / float(num_edges)
        mean_m = sum_m_ref[...] * inv_e
        var_m = jnp.maximum(sum_m2_ref[...] * inv_e - mean_m * mean_m, 0.0)
        stats_ref[0:1, :] = mean_m
        stats_ref[1:2, :] = var_m


# --------------------------------------------------------------------------- #
# Kernel B: edge BatchNorm (global stats) + SiLU + residual, large blocks,
# "parallel" grid axis (both v7x TensorCores usable).
# --------------------------------------------------------------------------- #
def _edge_bn_silu_kernel(m_ref, edge_ref, stats_ref, gamma_e_ref, beta_e_ref,
                         y_out_ref):
    m = m_ref[...]
    mh = ((m - stats_ref[0:1, :]) * jax.lax.rsqrt(stats_ref[1:2, :] + 1e-5)
          * gamma_e_ref[...] + beta_e_ref[...])
    y_out_ref[...] = edge_ref[...] + mh * jax.nn.sigmoid(mh)


# --------------------------------------------------------------------------- #
# Wrapper
# --------------------------------------------------------------------------- #
def _round_up(x, m):
    return ((x + m - 1) // m) * m


def _pick_edge_tile(num_edges, requested):
    te = 512 if requested is None else requested
    te = _round_up(max(8, te), 8)
    return min(te, _round_up(num_edges, 8))


def _pick_bn_tile(total, cap=1024):
    best, t = 8, 8
    while t <= min(total, cap):
        if total % t == 0:
            best = t
        t += 8
    return best


def edge_gated_graph_conv(node_feats, edge_feats, src_idx, dst_idx, params,
                          *, edge_tile=None):
    """node_feats: [N, F], edge_feats: [E, F], src_idx/dst_idx: [E] int32."""
    n, f = node_feats.shape
    e = edge_feats.shape[0]

    # --- edge tiling: pad E to a tile multiple, mask padded rows via idx=-1 ---
    te = _pick_edge_tile(e, edge_tile)
    e_pad = _round_up(e, te)
    pad = e_pad - e
    src_p = src_idx.astype(jnp.int32)
    dst_p = dst_idx.astype(jnp.int32)
    edge_feats_p = edge_feats
    if pad:
        edge_feats_p = jnp.pad(edge_feats, ((0, pad), (0, 0)))
        src_p = jnp.pad(src_p, (0, pad), constant_values=-1)
        dst_p = jnp.pad(dst_p, (0, pad), constant_values=-1)
    src_col = src_p.reshape(e_pad, 1)
    dst_col = dst_p.reshape(e_pad, 1)

    # --- hoisted fused node projection (kernel 0) -----------------------------
    w_node = jnp.concatenate([params["w_src_gate"], params["w_dst_update"],
                              params["w_dst_gate"], params["w_src_update"]],
                             axis=1)
    b_node = jnp.concatenate([params["b_src_gate"], params["b_dst_update"],
                              params["b_dst_gate"], params["b_src_update"]],
                             axis=1)
    esrc, bh, edst, ah = pl.pallas_call(
        _node_proj_kernel,
        out_shape=tuple(jax.ShapeDtypeStruct((n, f), jnp.float32)
                        for _ in range(4)),
        grid=(1,),
        in_specs=[pl.BlockSpec((n, f), lambda i: (0, 0)),
                  pl.BlockSpec((f, 4 * f), lambda i: (0, 0)),
                  pl.BlockSpec((1, 4 * f), lambda i: (0, 0))],
        out_specs=tuple(pl.BlockSpec((n, f), lambda i: (0, 0))
                        for _ in range(4)),
    )(node_feats, w_node, b_node)

    # --- kernel A: edge-tile accumulation -------------------------------------
    grid = (e_pad // te,)
    resident_bytes = 4 * (6 * n * f + 2 * n * f + f * f + 16 * f)
    streamed_bytes = 4 * 2 * (2 * te * f + 2 * te)          # double-buffered tiles
    vmem_need = resident_bytes + streamed_bytes
    cp_kwargs = dict(dimension_semantics=("arbitrary",))    # carries accumulators
    if vmem_need > (12 << 20):
        cp_kwargs["vmem_limit_bytes"] = min(int(vmem_need * 1.5), 64 << 20)

    x_out, m_out, stats = pl.pallas_call(
        functools.partial(_egc_accumulate_kernel, num_edges=e),
        out_shape=(jax.ShapeDtypeStruct((n, f), jnp.float32),     # x (nodes)
                   jax.ShapeDtypeStruct((e_pad, f), jnp.float32),  # m (edges)
                   jax.ShapeDtypeStruct((2, f), jnp.float32)),     # edge BN stats
        grid=grid,
        in_specs=[
            pl.BlockSpec((te, f), lambda i: (i, 0)),    # edge_feats tile
            pl.BlockSpec((te, 1), lambda i: (i, 0)),    # src index tile
            pl.BlockSpec((te, 1), lambda i: (i, 0)),    # dst index tile
            pl.BlockSpec((n, f), lambda i: (0, 0)),     # e_src (resident)
            pl.BlockSpec((n, f), lambda i: (0, 0)),     # Bh    (resident)
            pl.BlockSpec((n, f), lambda i: (0, 0)),     # e_dst (resident)
            pl.BlockSpec((n, f), lambda i: (0, 0)),     # Ah    (resident)
            pl.BlockSpec((n, f), lambda i: (0, 0)),     # node_feats (residual)
            pl.BlockSpec((f, f), lambda i: (0, 0)),     # edge_gate weight
            pl.BlockSpec((1, f), lambda i: (0, 0)),     # edge_gate bias
            pl.BlockSpec((1, f), lambda i: (0, 0)),     # bn_nodes gamma
            pl.BlockSpec((1, f), lambda i: (0, 0)),     # bn_nodes beta
        ],
        out_specs=(
            pl.BlockSpec((n, f), lambda i: (0, 0)),     # x_out (written last)
            pl.BlockSpec((te, f), lambda i: (i, 0)),    # m_out (streamed)
            pl.BlockSpec((2, f), lambda i: (0, 0)),     # stats (written last)
        ),
        scratch_shapes=[
            pltpu.VMEM((n, f), jnp.float32),            # sum_sigma_h accumulator
            pltpu.VMEM((n, f), jnp.float32),            # sum_sigma   accumulator
            pltpu.VMEM((1, f), jnp.float32),            # sum(m)
            pltpu.VMEM((1, f), jnp.float32),            # sum(m*m)
        ],
        compiler_params=pltpu.CompilerParams(**cp_kwargs),
    )(edge_feats_p, src_col, dst_col, esrc, bh, edst, ah, node_feats,
      params["w_edge_gate"], params["b_edge_gate"],
      params["gamma_n"], params["beta_n"])

    # --- kernel B: edge BN + SiLU + residual, its own (larger) block size ------
    te_b = _pick_bn_tile(e_pad)
    y_out = pl.pallas_call(
        _edge_bn_silu_kernel,
        out_shape=jax.ShapeDtypeStruct((e_pad, f), jnp.float32),
        grid=(e_pad // te_b,),
        in_specs=[
            pl.BlockSpec((te_b, f), lambda i: (i, 0)),  # m tile
            pl.BlockSpec((te_b, f), lambda i: (i, 0)),  # edge_feats tile
            pl.BlockSpec((2, f), lambda i: (0, 0)),     # stats (resident)
            pl.BlockSpec((1, f), lambda i: (0, 0)),     # bn_edges gamma
            pl.BlockSpec((1, f), lambda i: (0, 0)),     # bn_edges beta
        ],
        out_specs=pl.BlockSpec((te_b, f), lambda i: (i, 0)),
        compiler_params=pltpu.CompilerParams(
            dimension_semantics=("parallel",)),
    )(m_out, edge_feats_p, stats, params["gamma_e"], params["beta_e"])

    return x_out, y_out[:e]


# --------------------------------------------------------------------------- #
# Pure-JAX reference (mirrors the PyTorch EdgeGatedGraphConv forward).
# --------------------------------------------------------------------------- #
def _reference(node_feats, edge_feats, src_idx, dst_idx, params):
    lin = lambda v, w, b: v @ w + b
    e_src = lin(node_feats, params["w_src_gate"], params["b_src_gate"])
    e_dst = lin(node_feats, params["w_dst_gate"], params["b_dst_gate"])
    m = (e_src[src_idx] + e_dst[dst_idx]
         + lin(edge_feats, params["w_edge_gate"], params["b_edge_gate"]))
    sigma = jax.nn.sigmoid(m)
    bh = lin(node_feats, params["w_dst_update"], params["b_dst_update"])
    n = node_feats.shape[0]
    sum_sigma_h = jax.ops.segment_sum(bh[src_idx] * sigma, dst_idx, num_segments=n)
    sum_sigma = jax.ops.segment_sum(sigma, dst_idx, num_segments=n)
    x = (lin(node_feats, params["w_src_update"], params["b_src_update"])
         + sum_sigma_h / (sum_sigma + 1e-6))

    def bn_silu(v, gamma, beta):
        mu = jnp.mean(v, axis=0, keepdims=True)
        var = jnp.mean((v - mu) ** 2, axis=0, keepdims=True)
        vb = (v - mu) * jax.lax.rsqrt(var + 1e-5) * gamma + beta
        return vb * jax.nn.sigmoid(vb)

    x = node_feats + bn_silu(x, params["gamma_n"], params["beta_n"])
    y = edge_feats + bn_silu(m, params["gamma_e"], params["beta_e"])
    return x, y


if __name__ == "__main__":
    key = jax.random.PRNGKey(0)
    # Small shapes; E deliberately NOT a multiple of the tile to exercise the
    # pad + mask path. F_in == F_out so the residual connection applies.
    N, E, F = 40, 100, 32

    keys = jax.random.split(key, 16)
    node_feats = jax.random.normal(keys[0], (N, F), jnp.float32)
    edge_feats = jax.random.normal(keys[1], (E, F), jnp.float32)
    src_idx = jax.random.randint(keys[2], (E,), 0, N, dtype=jnp.int32)
    dst_idx = jax.random.randint(keys[3], (E,), 0, N, dtype=jnp.int32)

    def linear_init(k, f_in, f_out):
        k1, k2 = jax.random.split(k)
        s = 1.0 / float(f_in) ** 0.5
        return (jax.random.uniform(k1, (f_in, f_out), jnp.float32, -s, s),
                jax.random.uniform(k2, (1, f_out), jnp.float32, -s, s))

    params = {}
    for idx, name in enumerate(
            ["src_gate", "dst_gate", "edge_gate", "src_update", "dst_update"]):
        w, b = linear_init(keys[4 + idx], F, F)
        params[f"w_{name}"] = w
        params[f"b_{name}"] = b
    params["gamma_n"] = jax.random.uniform(keys[10], (1, F), jnp.float32, 0.5, 1.5)
    params["beta_n"] = jax.random.uniform(keys[11], (1, F), jnp.float32, -0.5, 0.5)
    params["gamma_e"] = jax.random.uniform(keys[12], (1, F), jnp.float32, 0.5, 1.5)
    params["beta_e"] = jax.random.uniform(keys[13], (1, F), jnp.float32, -0.5, 0.5)

    x, y = edge_gated_graph_conv(node_feats, edge_feats, src_idx, dst_idx,
                                 params, edge_tile=32)
    jax.block_until_ready((x, y))

    x_ref, y_ref = _reference(node_feats, edge_feats, src_idx, dst_idx, params)
    # Tolerance covers the EUP approx-reciprocal (+ Newton refinement) used for
    # the node aggregation; everything else is f32-exact.
    assert jnp.allclose(x, x_ref, atol=5e-4, rtol=5e-4), "node output mismatch"
    assert jnp.allclose(y, y_ref, atol=5e-4, rtol=5e-4), "edge output mismatch"

    print("KERNEL_OK")
</pallas_src>

<mosaic_0001>
module attributes {stable_mosaic.version = 11 : i64} {
  func.func @_node_proj_kernel(%arg0: i32, %arg1: memref<40x32xf32, #tpu.memory_space<vmem>>, %arg2: memref<32x128xf32, #tpu.memory_space<vmem>>, %arg3: memref<1x128xf32, #tpu.memory_space<vmem>>, %arg4: memref<40x32xf32, #tpu.memory_space<vmem>>, %arg5: memref<40x32xf32, #tpu.memory_space<vmem>>, %arg6: memref<40x32xf32, #tpu.memory_space<vmem>>, %arg7: memref<40x32xf32, #tpu.memory_space<vmem>>) attributes {dimension_semantics = [#tpu.dimension_semantics<arbitrary>], iteration_bounds = array<i64: 1>, scalar_prefetch = 0 : i64, scratch_operands = 0 : i64, tpu.core_type = #tpu.core_type<tc>, window_params = [{pipeline_mode = #tpu.pipeline_mode<synchronous>, transform_indices = @transform_0, window_bounds = array<i64: 40, 32>}, {pipeline_mode = #tpu.pipeline_mode<synchronous>, transform_indices = @transform_1, window_bounds = array<i64: 32, 128>}, {pipeline_mode = #tpu.pipeline_mode<synchronous>, transform_indices = @transform_2, window_bounds = array<i64: 1, 128>}, {pipeline_mode = #tpu.pipeline_mode<synchronous>, transform_indices = @transform_3, window_bounds = array<i64: 40, 32>}, {pipeline_mode = #tpu.pipeline_mode<synchronous>, transform_indices = @transform_4, window_bounds = array<i64: 40, 32>}, {pipeline_mode = #tpu.pipeline_mode<synchronous>, transform_indices = @transform_5, window_bounds = array<i64: 40, 32>}, {pipeline_mode = #tpu.pipeline_mode<synchronous>, transform_indices = @transform_6, window_bounds = array<i64: 40, 32>}]} {
    %c0 = arith.constant 0 : index
    %c0_0 = arith.constant 0 : index
    %0 = vector.load %arg1[%c0, %c0_0] : memref<40x32xf32, #tpu.memory_space<vmem>>, vector<40x32xf32>
    %c0_1 = arith.constant 0 : index
    %c0_2 = arith.constant 0 : index
    %1 = vector.load %arg2[%c0_1, %c0_2] : memref<32x128xf32, #tpu.memory_space<vmem>>, vector<32x128xf32>
    %cst = arith.constant dense<0.000000e+00> : vector<40x128xf32>
    %2 = tpu.matmul %0, %1, %cst {dimension_numbers = #tpu.dot_dimension_numbers<[1], [0], [0], [1], [0, 0, 1, 1], [], []>} : vector<40x32xf32>, vector<32x128xf32>, vector<40x128xf32> -> vector<40x128xf32>
    %c0_3 = arith.constant 0 : index
    %c0_4 = arith.constant 0 : index
    %3 = vector.load %arg3[%c0_3, %c0_4] : memref<1x128xf32, #tpu.memory_space<vmem>>, vector<1x128xf32>
    %4 = vector.broadcast %3 : vector<1x128xf32> to vector<40x128xf32>
    %5 = arith.addf %2, %4 : vector<40x128xf32>
    %6 = vector.extract_strided_slice %5 {offsets = [0, 0], sizes = [40, 32], strides = [1, 1]} : vector<40x128xf32> to vector<40x32xf32>
    %c0_5 = arith.constant 0 : index
    %c0_6 = arith.constant 0 : index
    %7 = vector.load %arg4[%c0_5, %c0_6] : memref<40x32xf32, #tpu.memory_space<vmem>>, vector<40x32xf32>
    tpu.vector_store %arg4[%c0_5, %c0_6], %6 {strides = array<i32>} : memref<40x32xf32, #tpu.memory_space<vmem>>, vector<40x32xf32>,
    %8 = vector.extract_strided_slice %5 {offsets = [0, 32], sizes = [40, 32], strides = [1, 1]} : vector<40x128xf32> to vector<40x32xf32>
    %c0_7 = arith.constant 0 : index
    %c0_8 = arith.constant 0 : index
    %9 = vector.load %arg5[%c0_7, %c0_8] : memref<40x32xf32, #tpu.memory_space<vmem>>, vector<40x32xf32>
    tpu.vector_store %arg5[%c0_7, %c0_8], %8 {strides = array<i32>} : memref<40x32xf32, #tpu.memory_space<vmem>>, vector<40x32xf32>,
    %10 = vector.extract_strided_slice %5 {offsets = [0, 64], sizes = [40, 32], strides = [1, 1]} : vector<40x128xf32> to vector<40x32xf32>
    %c0_9 = arith.constant 0 : index
    %c0_10 = arith.constant 0 : index
    %11 = vector.load %arg6[%c0_9, %c0_10] : memref<40x32xf32, #tpu.memory_space<vmem>>, vector<40x32xf32>
    tpu.vector_store %arg6[%c0_9, %c0_10], %10 {strides = array<i32>} : memref<40x32xf32, #tpu.memory_space<vmem>>, vector<40x32xf32>,
    %12 = vector.extract_strided_slice %5 {offsets = [0, 96], sizes = [40, 32], strides = [1, 1]} : vector<40x128xf32> to vector<40x32xf32>
    %c0_11 = arith.constant 0 : index
    %c0_12 = arith.constant 0 : index
    %13 = vector.load %arg7[%c0_11, %c0_12] : memref<40x32xf32, #tpu.memory_space<vmem>>, vector<40x32xf32>
    tpu.vector_store %arg7[%c0_11, %c0_12], %12 {strides = array<i32>} : memref<40x32xf32, #tpu.memory_space<vmem>>, vector<40x32xf32>,
    return
  }
  func.func @transform_0(%arg0: i32) -> (i32, i32) {
    %c0_i32 = arith.constant 0 : i32
    %c0_i32_0 = arith.constant 0 : i32
    %c0_i32_1 = arith.constant 0 : i32
    return %c0_i32, %c0_i32_0 : i32, i32
  }
  func.func @transform_1(%arg0: i32) -> (i32, i32) {
    %c0_i32 = arith.constant 0 : i32
    %c0_i32_0 = arith.constant 0 : i32
    %c0_i32_1 = arith.constant 0 : i32
    return %c0_i32, %c0_i32_0 : i32, i32
  }
  func.func @transform_2(%arg0: i32) -> (i32, i32) {
    %c0_i32 = arith.constant 0 : i32
    %c0_i32_0 = arith.constant 0 : i32
    %c0_i32_1 = arith.constant 0 : i32
    return %c0_i32, %c0_i32_0 : i32, i32
  }
  func.func @transform_3(%arg0: i32) -> (i32, i32) {
    %c0_i32 = arith.constant 0 : i32
    %c0_i32_0 = arith.constant 0 : i32
    %c0_i32_1 = arith.constant 0 : i32
    return %c0_i32, %c0_i32_0 : i32, i32
  }
  func.func @transform_4(%arg0: i32) -> (i32, i32) {
    %c0_i32 = arith.constant 0 : i32
    %c0_i32_0 = arith.constant 0 : i32
    %c0_i32_1 = arith.constant 0 : i32
    return %c0_i32, %c0_i32_0 : i32, i32
  }
  func.func @transform_5(%arg0: i32) -> (i32, i32) {
    %c0_i32 = arith.constant 0 : i32
    %c0_i32_0 = arith.constant 0 : i32
    %c0_i32_1 = arith.constant 0 : i32
    return %c0_i32, %c0_i32_0 : i32, i32
  }
  func.func @transform_6(%arg0: i32) -> (i32, i32) {
    %c0_i32 = arith.constant 0 : i32
    %c0_i32_0 = arith.constant 0 : i32
    %c0_i32_1 = arith.constant 0 : i32
    return %c0_i32, %c0_i32_0 : i32, i32
  }
}

</mosaic_0001>

<llo_original>
// kernel: tpu_custom_call.1
$region0: #{tpu_custom_call.1}
  #allocation0 [shape = 'u32[]', space=smem, size = 0x4, offset = 0x4, fixed_abs, tag = 'smem constant byte address 0x4 - core index']
  #allocation1 [shape = 'u32[144,128]{1,0:T(1,128)}', space=vmem, size = 0x12000, scoped, tag = 'internal scratch']
  %s0 = inlined_call_operand.vmem [shape: f32[40,32], index: 0, kind: input, shape index: {}]
  %s1 = inlined_call_operand.vmem [shape: f32[32,128], index: 1, kind: input, shape index: {}]
  %s2 = inlined_call_operand.vmem [shape: f32[1,128], index: 2, kind: input, shape index: {}]
  %s3 = inlined_call_operand.vmem [shape: f32[40,32], index: 3, kind: output, shape index: {0}]
  %s4 = inlined_call_operand.vmem [shape: f32[40,32], index: 4, kind: output, shape index: {1}]
  %s5 = inlined_call_operand.vmem [shape: f32[40,32], index: 5, kind: output, shape index: {2}]
  %s6 = inlined_call_operand.vmem [shape: f32[40,32], index: 6, kind: output, shape index: {3}]
  %7 = xla_tuple %s3, %s4, %s5, %s6
  %s8 = sld [smem:[#allocation0]]
  $region46: #{tpu_custom_call.1} parent=0
    _
  %s10 = ssub.s32 1, %s8
  %s11 = scalar_select 0, %s10, %s8
  // Predicated region
  $region2: #{tpu_custom_call.1} parent=0 // pred_check
    _
  $region3: #{tpu_custom_call.1} parent=0 // pred_check_branch
    %13 = sbr.rel (0) target = $region5
  $region4: #{tpu_custom_call.1} parent=0 // pred_region
    _
  $region5: #{tpu_custom_call.1} parent=0 // pred_fallthru
    _
  // Predicated region
  $region6: #{tpu_custom_call.1} parent=0 // pred_check
    _
  $region7: #{tpu_custom_call.1} parent=0 // pred_check_branch
    %15 = sbr.rel (0) target = $region9
  $region8: #{tpu_custom_call.1} parent=0 // pred_region
    _
  $region9: #{tpu_custom_call.1} parent=0 // pred_fallthru
    _
  // Predicated region
  $region10: #{tpu_custom_call.1} parent=0 // pred_check
    _
  $region11: #{tpu_custom_call.1} parent=0 // pred_check_branch
    %17 = sbr.rel (0) target = $region13
  $region12: #{tpu_custom_call.1} parent=0 // pred_region
    _
  $region13: #{tpu_custom_call.1} parent=0 // pred_fallthru
    _
  %v18 = vld [vmem:[%s0] sm:$0xff]
  %v19 = vld [vmem:[%s0 + $0x8] sm:$0xff]
  %v20 = vld [vmem:[%s0 + $0x10] sm:$0xff]
  %v21 = vld [vmem:[%s0 + $0x18] sm:$0xff]
  %v22 = vld [vmem:[%s0 + $0x20] sm:$0xff]
  %v23 = vld [vmem:[%s1] sm:$0xff]
  %v24 = vld [vmem:[%s1 + $0x8] sm:$0xff]
  %v25 = vld [vmem:[%s1 + $0x10] sm:$0xff]
  %v26 = vld [vmem:[%s1 + $0x18] sm:$0xff]
  %v27 = vld [vmem:[%s2] sm:$0x1]
  %v29 = vlaneseq
  %v30 = vshrl.u32 %v29, 7
  %v31 = vsub.s32 0, %v30
  %v32 = vrot.slane %v27, %v31
  %vm34 = vcmask 261120
  %v36 = vsel %vm34, %v18, 0
  %v39 = vsel %vm34, %v19, 0
  %v42 = vsel %vm34, %v20, 0
  %v45 = vsel %vm34, %v21, 0
  %v48 = vsel %vm34, %v22, 0
  %50 = vmatprep.subr.mxu0 0.0
  %51 = vmatpush1.msra.mxu0 %v23
  %52 = vmatprep.subr.mxu0 0.0
  %53 = vmatpush1.msra.mxu0 %v24
  %54 = vmatprep.subr.mxu0 0.0
  %55 = vmatpush1.msra.mxu0 %v25
  %56 = vmatprep.subr.mxu0 0.0
  %57 = vmatpush1.msra.mxu0 %v26
  %58 = vmatprep.subr.mxu0 0.0
  %59 = vmatpush1.msra.mxu0 0.0
  %60 = vmatprep.subr.mxu0 0.0
  %61 = vmatpush1.msra.mxu0 0.0
  %62 = vmatprep.subr.mxu0 0.0
  %63 = vmatpush1.msra.mxu0 0.0
  %64 = vmatprep.subr.mxu0 0.0
  %65 = vmatpush1.msra.mxu0 0.0
  %66 = vmatprep.subr.mxu0 0.0
  %67 = vmatpush1.msra.mxu0 0.0
  %68 = vmatprep.subr.mxu0 0.0
  %69 = vmatpush1.msra.mxu0 0.0
  %70 = vmatprep.subr.mxu0 0.0
  %71 = vmatpush1.msra.mxu0 0.0
  %72 = vmatprep.subr.mxu0 0.0
  %73 = vmatpush1.msra.mxu0 0.0
  %74 = vmatprep.subr.mxu0 0.0
  %75 = vmatpush1.msra.mxu0 0.0
  %76 = vmatprep.subr.mxu0 0.0
  %77 = vmatpush1.msra.mxu0 0.0
  %78 = vmatprep.subr.mxu0 0.0
  %79 = vmatpush1.msra.mxu0 0.0
  %80 = vmatprep.subr.mxu0 0.0
  %81 = vmatpush1.msra.mxu0 0.0
  %82 = vmatprep.subr.mxu0 0.0
  %83 = vmatpush1.msra.mxu0 0.0
  %84 = vmatprep.subr.mxu0 0.0
  %85 = vmatpush1.msra.mxu0 0.0
  %86 = vmatprep.subr.mxu0 0.0
  %87 = vmatpush1.msra.mxu0 0.0
  %88 = vmatprep.subr.mxu0 0.0
  %89 = vmatpush1.msra.mxu0 0.0
  %90 = vmatprep.subr.mxu0 0.0
  %91 = vmatpush1.msra.mxu0 0.0
  %92 = vmatprep.subr.mxu0 0.0
  %93 = vmatpush1.msra.mxu0 0.0
  %94 = vmatprep.subr.mxu0 0.0
  %95 = vmatpush1.msra.mxu0 0.0
  %96 = vmatprep.subr.mxu0 0.0
  %97 = vmatpush1.msra.mxu0 0.0
  %98 = vmatprep.subr.mxu0 0.0
  %99 = vmatpush1.msra.mxu0 0.0
  %100 = vmatprep.subr.mxu0 0.0
  %101 = vmatpush1.msra.mxu0 0.0
  %102 = vmatprep.subr.mxu0 0.0
  %103 = vmatpush1.msra.mxu0 0.0
  %104 = vmatprep.subr.mxu0 0.0
  %105 = vmatpush1.msra.mxu0 0.0
  %106 = vmatprep.subr.mxu0 0.0
  %107 = vmatpush1.msra.mxu0 0.0
  %108 = vmatprep.subr.mxu0 0.0
  %109 = vmatpush1.msra.mxu0 0.0
  %110 = vmatprep.subr.mxu0 0.0
  %111 = vmatpush1.msra.mxu0 0.0
  %112 = vmatprep.subr.mxu0 0.0
  %113 = vmatpush1.msra.mxu0 0.0
  %114 = vmatprep.mubr.f32.mxu0 0.0
  %115 = vmatmul.mubr.f32.gmra.mrb[0].mxu0 %v36
  %v116 = vpop.f32.mrb[0].mxu0
  %v117 = vadd.f32 %v32, %v116
  %v118 = vpop.f32.mrb[0].mxu0
  %119 = vmatprep.mubr.f32.mxu0 0.0
  %120 = vmatmul.mubr.f32.gmra.mrb[0].mxu0 %v39
  %v121 = vpop.f32.mrb[0].mxu0
  %v122 = vadd.f32 %v32, %v121
  %v123 = vpop.f32.mrb[0].mxu0
  %124 = vmatprep.mubr.f32.mxu0 0.0
  %125 = vmatmul.mubr.f32.gmra.mrb[0].mxu0 %v42
  %v126 = vpop.f32.mrb[0].mxu0
  %v127 = vadd.f32 %v32, %v126
  %v128 = vpop.f32.mrb[0].mxu0
  %129 = vmatprep.mubr.f32.mxu0 0.0
  %130 = vmatmul.mubr.f32.gmra.mrb[0].mxu0 %v45
  %v131 = vpop.f32.mrb[0].mxu0
  %v132 = vadd.f32 %v32, %v131
  %v133 = vpop.f32.mrb[0].mxu0
  %134 = vmatprep.mubr.f32.mxu0 0.0
  %135 = vmatmul.mubr.f32.gmra.mrb[0].mxu0 %v48
  %v136 = vpop.f32.mrb[0].mxu0
  %v137 = vadd.f32 %v32, %v136
  %v138 = vpop.f32.mrb[0].mxu0
  %139 = vdwg.mxu0
  %140 = vst.msk [vmem:[%s3] sm:$0xff] %vm34, %v117
  %141 = vst.msk [vmem:[%s3 + $0x8] sm:$0xff] %vm34, %v122
  %142 = vst.msk [vmem:[%s3 + $0x10] sm:$0xff] %vm34, %v127
  %143 = vst.msk [vmem:[%s3 + $0x18] sm:$0xff] %vm34, %v132
  %144 = vst.msk [vmem:[%s3 + $0x20] sm:$0xff] %vm34, %v137
  %150 = vrot.lane.b32.xlu0 %v117, 96
  %v151 = vpop.permute.xlu0 %150
  %152 = vrot.lane.b32.xlu0 %v122, 96
  %v153 = vpop.permute.xlu0 %152
  %154 = vrot.lane.b32.xlu0 %v127, 96
  %v155 = vpop.permute.xlu0 %154
  %156 = vrot.lane.b32.xlu0 %v132, 96
  %v157 = vpop.permute.xlu0 %156
  %158 = vrot.lane.b32.xlu0 %v137, 96
  %v159 = vpop.permute.xlu0 %158
  %165 = vst.msk [vmem:[%s4] sm:$0xff] %vm34, %v151
  %166 = vst.msk [vmem:[%s4 + $0x8] sm:$0xff] %vm34, %v153
  %167 = vst.msk [vmem:[%s4 + $0x10] sm:$0xff] %vm34, %v155
  %168 = vst.msk [vmem:[%s4 + $0x18] sm:$0xff] %vm34, %v157
  %169 = vst.msk [vmem:[%s4 + $0x20] sm:$0xff] %vm34, %v159
  %170 = vrot.lane.b32.xlu0 %v117, 64
  %v171 = vpop.permute.xlu0 %170
  %172 = vrot.lane.b32.xlu0 %v122, 64
  %v173 = vpop.permute.xlu0 %172
  %174 = vrot.lane.b32.xlu0 %v127, 64
  %v175 = vpop.permute.xlu0 %174
  %176 = vrot.lane.b32.xlu0 %v132, 64
  %v177 = vpop.permute.xlu0 %176
  %178 = vrot.lane.b32.xlu0 %v137, 64
  %v179 = vpop.permute.xlu0 %178
  %185 = vst.msk [vmem:[%s5] sm:$0xff] %vm34, %v171
  %186 = vst.msk [vmem:[%s5 + $0x8] sm:$0xff] %vm34, %v173
  %187 = vst.msk [vmem:[%s5 + $0x10] sm:$0xff] %vm34, %v175
  %188 = vst.msk [vmem:[%s5 + $0x18] sm:$0xff] %vm34, %v177
  %189 = vst.msk [vmem:[%s5 + $0x20] sm:$0xff] %vm34, %v179
  %190 = vrot.lane.b32.xlu0 %v117, 32
  %v191 = vpop.permute.xlu0 %190
  %192 = vrot.lane.b32.xlu0 %v122, 32
  %v193 = vpop.permute.xlu0 %192
  %194 = vrot.lane.b32.xlu0 %v127, 32
  %v195 = vpop.permute.xlu0 %194
  %196 = vrot.lane.b32.xlu0 %v132, 32
  %v197 = vpop.permute.xlu0 %196
  %198 = vrot.lane.b32.xlu0 %v137, 32
  %v199 = vpop.permute.xlu0 %198
  %205 = vst.msk [vmem:[%s6] sm:$0xff] %vm34, %v191
  %206 = vst.msk [vmem:[%s6 + $0x8] sm:$0xff] %vm34, %v193
  %207 = vst.msk [vmem:[%s6 + $0x10] sm:$0xff] %vm34, %v195
  %208 = vst.msk [vmem:[%s6 + $0x18] sm:$0xff] %vm34, %v197
  %209 = vst.msk [vmem:[%s6 + $0x20] sm:$0xff] %vm34, %v199
  // Predicated region
  $region14: #{tpu_custom_call.1} parent=0 // pred_check
    _
  $region15: #{tpu_custom_call.1} parent=0 // pred_check_branch
    %211 = sbr.rel (0) target = $region17
  $region16: #{tpu_custom_call.1} parent=0 // pred_region
    _
  $region17: #{tpu_custom_call.1} parent=0 // pred_fallthru
    _
  // Predicated region
  $region18: #{tpu_custom_call.1} parent=0 // pred_check
    _
  $region19: #{tpu_custom_call.1} parent=0 // pred_check_branch
    %213 = sbr.rel (0) target = $region21
  $region20: #{tpu_custom_call.1} parent=0 // pred_region
    _
  $region21: #{tpu_custom_call.1} parent=0 // pred_fallthru
    _
  // Predicated region
  $region22: #{tpu_custom_call.1} parent=0 // pred_check
    _
  $region23: #{tpu_custom_call.1} parent=0 // pred_check_branch
    %215 = sbr.rel (0) target = $region25
  $region24: #{tpu_custom_call.1} parent=0 // pred_region
    _
  $region25: #{tpu_custom_call.1} parent=0 // pred_fallthru
    _
  // Predicated region
  $region26: #{tpu_custom_call.1} parent=0 // pred_check
    _
  $region27: #{tpu_custom_call.1} parent=0 // pred_check_branch
    %217 = sbr.rel (0) target = $region29
  $region28: #{tpu_custom_call.1} parent=0 // pred_region
    _
  $region29: #{tpu_custom_call.1} parent=0 // pred_fallthru
    _
  // Predicated region
  $region30: #{tpu_custom_call.1} parent=0 // pred_check
    _
  $region31: #{tpu_custom_call.1} parent=0 // pred_check_branch
    %219 = sbr.rel (0) target = $region33
  $region32: #{tpu_custom_call.1} parent=0 // pred_region
    _
  $region33: #{tpu_custom_call.1} parent=0 // pred_fallthru
    _
  // Predicated region
  $region34: #{tpu_custom_call.1} parent=0 // pred_check
    _
  $region35: #{tpu_custom_call.1} parent=0 // pred_check_branch
    %221 = sbr.rel (0) target = $region37
  $region36: #{tpu_custom_call.1} parent=0 // pred_region
    _
  $region37: #{tpu_custom_call.1} parent=0 // pred_fallthru
    _
  // Predicated region
  $region38: #{tpu_custom_call.1} parent=0 // pred_check
    _
  $region39: #{tpu_custom_call.1} parent=0 // pred_check_branch
    %223 = sbr.rel (0) target = $region41
  $region40: #{tpu_custom_call.1} parent=0 // pred_region
    _
  $region41: #{tpu_custom_call.1} parent=0 // pred_fallthru
    _
  // Predicated region
  $region42: #{tpu_custom_call.1} parent=0 // pred_check
    _
  $region43: #{tpu_custom_call.1} parent=0 // pred_check_branch
    %225 = sbr.rel (0) target = $region45
  $region44: #{tpu_custom_call.1} parent=0 // pred_region
    _
  $region45: #{tpu_custom_call.1} parent=0 // pred_fallthru
    _

</llo_original>
